<compile_context>
chip_gen: v5e
topology: v5e:2x2
jax: 0.10.0
libtpu: 0.0.40
codegen_flags: <defaults>
</compile_context>

<pallas_src>
import functools

import jax
import jax.numpy as jnp
from jax import lax
from jax.experimental import pallas as pl
from jax.experimental.pallas import tpu as pltpu

EPS = 1e-3  # matches BatchNorm2d(160, eps=0.001)


def _round_up(v, m):
    return (v + m - 1) // m * m


def _tpu_vmem_and_cores():
    """Generation-aware (VMEM capacity, TensorCores-per-chip) with safe fallbacks."""
    vmem_bytes = 64 * 1024 * 1024  # conservative default (v7x per-TC VMEM)
    cores = None
    try:
        info = pltpu.get_tpu_info()
        v = getattr(info, "vmem_capacity_bytes", None)
        if v:
            vmem_bytes = int(v)
        for attr in ("num_cores", "num_tensorcores", "tensorcores_per_chip",
                     "cores_per_chip"):
            cv = getattr(info, attr, None)
            if cv:
                cores = int(cv)
                break
    except Exception:
        pass
    if cores is None:
        # Heuristic: 64-MiB-per-core parts (v7x) have 2 TensorCores/chip,
        # 128-MiB parts (v5e/v6e) have 1.
        cores = 2 if vmem_bytes <= 80 * 1024 * 1024 else 1
    return vmem_bytes, cores


# --------------------------- resident path kernel ---------------------------
def _bn_resident_kernel(x_ref, p_ref, o_ref, *, inv_count, eps):
    # x_ref: (N, TC, L); p_ref: (TC, 2) f32 with [:, 0] = gamma, [:, 1] = beta.
    # First sweep: per-channel mean.
    mean = jnp.sum(x_ref[...].astype(jnp.float32), axis=(0, 2),
                   keepdims=True) * inv_count                      # (1, TC, 1)
    # Second (centered) sweep: variance without the E[x^2]-E[x]^2 cancellation.
    # Fresh x_ref read keeps the live range of the big slab short.
    d = x_ref[...].astype(jnp.float32) - mean
    var = jnp.sum(d * d, axis=(0, 2), keepdims=True) * inv_count   # (1, TC, 1)
    inv_std = lax.rsqrt(var + eps)

    gamma = p_ref[:, 0:1].reshape(1, -1, 1)
    beta = p_ref[:, 1:2].reshape(1, -1, 1)
    # Fold gamma / inv_std / mean into one per-channel scale & shift so the
    # normalize sweep is a single mul + add per element.
    scale = inv_std * gamma
    shift = beta - mean * scale
    # Third sweep: normalize (fresh read again; VMEM loads are cheap).
    o_ref[...] = (x_ref[...].astype(jnp.float32) * scale
                  + shift).astype(o_ref.dtype)
    # TODO(synk): on v6e/v7x a bf16 input could do this mul+add in bf16 to
    # halve epilogue vreg/store traffic (keep f32 on v5e: no bf16 VALU).


# --------------------------- streaming path kernels -------------------------
def _bn_stats_kernel(x_ref, p_ref, stat_ref, s1_ref, s2_ref, *, inv_count, eps):
    # x_ref: (N, TC, TL); p_ref: (TC, 2); stat_ref: (TC, 2) output (scale, shift)
    li = pl.program_id(1)

    @pl.when(li == 0)
    def _():
        s1_ref[...] = jnp.zeros_like(s1_ref)
        s2_ref[...] = jnp.zeros_like(s2_ref)

    x = x_ref[...].astype(jnp.float32)
    # One-pass accumulation (sum, sum-sq) in f32 scratch.  Zero-padded L
    # contributes nothing; the true element count is baked into inv_count.
    s1_ref[...] += jnp.sum(x, axis=(0, 2), keepdims=True)[0]        # (TC, 1)
    s2_ref[...] += jnp.sum(x * x, axis=(0, 2), keepdims=True)[0]    # (TC, 1)

    @pl.when(li == pl.num_programs(1) - 1)
    def _():
        mean = s1_ref[...] * inv_count
        var = jnp.maximum(s2_ref[...] * inv_count - mean * mean, 0.0)
        inv_std = lax.rsqrt(var + eps)
        gamma = p_ref[:, 0:1]
        beta = p_ref[:, 1:2]
        scale = inv_std * gamma
        shift = beta - mean * scale
        stat_ref[:, 0:1] = scale
        stat_ref[:, 1:2] = shift


def _bn_apply_kernel(x_ref, stat_ref, o_ref):
    scale = stat_ref[:, 0:1].reshape(1, -1, 1)
    shift = stat_ref[:, 1:2].reshape(1, -1, 1)
    o_ref[...] = (x_ref[...].astype(jnp.float32) * scale
                  + shift).astype(o_ref.dtype)


# --------------------------------- wrapper ----------------------------------
def _pad_channels(x_ncl, params, c, c_pad):
    if c_pad == c:
        return x_ncl, params
    dc = c_pad - c
    return (jnp.pad(x_ncl, ((0, 0), (0, dc), (0, 0))),
            jnp.pad(params, ((0, dc), (0, 0))))


def batchnorm2d_train(x_nchw, gamma, beta, *, eps=EPS, vmem_budget_override=None):
    """BatchNorm2d forward (training mode: batch statistics). NCHW in/out.

    TODO(synk): PyTorch also updates running_mean / running_var buffers in
    training mode; that module state is not part of the returned tensor.
    """
    n, c, h, w = x_nchw.shape
    l = h * w
    itemsize = jnp.dtype(x_nchw.dtype).itemsize

    vmem_bytes, cores = _tpu_vmem_and_cores()
    # Scoped-VMEM request and the budget allowed for the (double-buffered)
    # input+output block pair: ~96/64 MiB on 128-MiB parts, ~48/32 MiB on v7x.
    vmem_limit = int(min(vmem_bytes * 3 // 4, 96 * 1024 * 1024))
    block_budget = vmem_limit * 2 // 3
    if vmem_budget_override is not None:
        block_budget = int(vmem_budget_override)

    c_pad8 = _round_up(c, 8)
    inv_count = 1.0 / float(n * l)

    # NCHW -> (N, C, H*W): pure reshape of a contiguous array (free).
    x_ncl = x_nchw.reshape(n, c, l)
    # gamma/beta packed into a single (C, 2) f32 array: one contiguous param
    # DMA per channel block instead of two strided (1, TC, 1) transfers.
    params = jnp.stack(
        [gamma.astype(jnp.float32), beta.astype(jnp.float32)], axis=1)

    streaming = 4 * n * 8 * l * itemsize > block_budget

    if not streaming:
        # ------------- resident path: whole (N, TC, L) slab in VMEM ----------
        tc = c_pad8
        while tc > 8 and 4 * n * tc * l * itemsize > block_budget:
            tc = max(8, _round_up(tc // 2, 8))
        # Megacore: on 2-core chips give each core at least one channel block.
        if cores >= 2 and c_pad8 // tc < cores and c_pad8 >= 16:
            tc = min(tc, max(8, _round_up(pl.cdiv(c_pad8, cores), 8)))
        c_pad = _round_up(c_pad8, tc)

        x_in, p_in = _pad_channels(x_ncl, params, c, c_pad)

        kernel = functools.partial(
            _bn_resident_kernel, inv_count=inv_count, eps=float(eps))
        out_ncl = pl.pallas_call(
            kernel,
            out_shape=jax.ShapeDtypeStruct((n, c_pad, l), x_nchw.dtype),
            grid=(c_pad // tc,),
            in_specs=[
                pl.BlockSpec((n, tc, l), lambda i: (0, i, 0)),
                pl.BlockSpec((tc, 2), lambda i: (i, 0)),
            ],
            out_specs=pl.BlockSpec((n, tc, l), lambda i: (0, i, 0)),
            compiler_params=pltpu.CompilerParams(
                dimension_semantics=("parallel",),
                vmem_limit_bytes=vmem_limit,
            ),
            cost_estimate=pl.CostEstimate(
                flops=int(7 * n * c_pad * l),
                transcendentals=int(c_pad),
                bytes_accessed=int(2 * n * c_pad * l * itemsize + 8 * c_pad),
            ),
        )(x_in, p_in)
        out_ncl = out_ncl[:, :c, :]
        return out_ncl.reshape(n, c, h, w)

    # ------------- streaming path: L-tiled stats + elementwise apply ---------
    l_pad = _round_up(l, 128)
    tl = 128
    for cand in (512, 256):
        if l_pad % cand == 0 and 4 * n * 8 * cand * itemsize <= block_budget:
            tl = cand
            break
    tc = c_pad8
    while tc > 8 and 4 * n * tc * tl * itemsize > block_budget:
        tc = max(8, _round_up(tc // 2, 8))
    if cores >= 2 and c_pad8 // tc < cores and c_pad8 >= 16:
        tc = min(tc, max(8, _round_up(pl.cdiv(c_pad8, cores), 8)))
    c_pad = _round_up(c_pad8, tc)

    x_in, p_in = _pad_channels(x_ncl, params, c, c_pad)
    if l_pad != l:
        # Zero padding along L is exact: it adds nothing to sum / sum-sq and
        # the true element count is baked into inv_count.
        x_in = jnp.pad(x_in, ((0, 0), (0, 0), (0, l_pad - l)))

    grid = (c_pad // tc, l_pad // tl)
    stats = pl.pallas_call(
        functools.partial(_bn_stats_kernel, inv_count=inv_count, eps=float(eps)),
        out_shape=jax.ShapeDtypeStruct((c_pad, 2), jnp.float32),
        grid=grid,
        in_specs=[
            pl.BlockSpec((n, tc, tl), lambda ci, li: (0, ci, li)),
            pl.BlockSpec((tc, 2), lambda ci, li: (ci, 0)),
        ],
        out_specs=pl.BlockSpec((tc, 2), lambda ci, li: (ci, 0)),
        scratch_shapes=[pltpu.VMEM((tc, 1), jnp.float32),
                        pltpu.VMEM((tc, 1), jnp.float32)],
        compiler_params=pltpu.CompilerParams(
            dimension_semantics=("parallel", "arbitrary"),
            vmem_limit_bytes=vmem_limit,
        ),
    )(x_in, p_in)

    out_pad = pl.pallas_call(
        _bn_apply_kernel,
        out_shape=jax.ShapeDtypeStruct((n, c_pad, l_pad), x_nchw.dtype),
        grid=grid,
        in_specs=[
            pl.BlockSpec((n, tc, tl), lambda ci, li: (0, ci, li)),
            pl.BlockSpec((tc, 2), lambda ci, li: (ci, 0)),
        ],
        out_specs=pl.BlockSpec((n, tc, tl), lambda ci, li: (0, ci, li)),
        compiler_params=pltpu.CompilerParams(
            dimension_semantics=("parallel", "parallel"),
            vmem_limit_bytes=vmem_limit,
        ),
    )(x_in, stats)
    return out_pad[:, :c, :l].reshape(n, c, h, w)


# --------------------------------- testing ----------------------------------
def _reference_bn(x, gamma, beta, eps=EPS):
    xf = x.astype(jnp.float32)
    mean = jnp.mean(xf, axis=(0, 2, 3), keepdims=True)
    var = jnp.mean((xf - mean) ** 2, axis=(0, 2, 3), keepdims=True)
    y = (xf - mean) * lax.rsqrt(var + eps)
    y = y * gamma.reshape(1, -1, 1, 1) + beta.reshape(1, -1, 1, 1)
    return y.astype(x.dtype)


if __name__ == "__main__":
    key = jax.random.PRNGKey(0)
    kx, kg, kb, kx2, kg2, kb2 = jax.random.split(key, 6)

    # Module shape: BatchNorm2d(160) applied to [1, 160, 14, 14].
    x = jax.random.normal(kx, (1, 160, 14, 14), dtype=jnp.float32)
    gamma = 1.0 + 0.05 * jax.random.normal(kg, (160,), dtype=jnp.float32)
    beta = 0.02 * jax.random.normal(kb, (160,), dtype=jnp.float32)

    y = jax.jit(batchnorm2d_train)(x, gamma, beta)
    jax.block_until_ready(y)
    err = float(jnp.max(jnp.abs(y - _reference_bn(x, gamma, beta))))
    assert err < 2e-4, f"resident path mismatch vs reference: {err}"

    # Exercise the L-streaming fallback path by forcing a tiny block budget.
    x2 = jax.random.normal(kx2, (2, 16, 16, 32), dtype=jnp.float32)
    gamma2 = 1.0 + 0.05 * jax.random.normal(kg2, (16,), dtype=jnp.float32)
    beta2 = 0.02 * jax.random.normal(kb2, (16,), dtype=jnp.float32)
    bn_stream = jax.jit(functools.partial(batchnorm2d_train,
                                          vmem_budget_override=16 * 1024))
    y2 = bn_stream(x2, gamma2, beta2)
    jax.block_until_ready(y2)
    err2 = float(jnp.max(jnp.abs(y2 - _reference_bn(x2, gamma2, beta2))))
    assert err2 < 2e-4, f"streaming path mismatch vs reference: {err2}"

    print("KERNEL_OK")
</pallas_src>

<mosaic_0001>
module attributes {stable_mosaic.version = 11 : i64} {
  func.func @_bn_resident_kernel(%arg0: i32, %arg1: memref<1x80x196xf32, #tpu.memory_space<vmem>>, %arg2: memref<80x2xf32, #tpu.memory_space<vmem>>, %arg3: memref<1x80x196xf32, #tpu.memory_space<vmem>>) attributes {dimension_semantics = [#tpu.dimension_semantics<parallel>], iteration_bounds = array<i64: 2>, scalar_prefetch = 0 : i64, scratch_operands = 0 : i64, tpu.core_type = #tpu.core_type<tc>, window_params = [{transform_indices = @transform_0, window_bounds = array<i64: 1, 80, 196>}, {transform_indices = @transform_1, window_bounds = array<i64: 80, 2>}, {transform_indices = @transform_2, window_bounds = array<i64: 1, 80, 196>}]} {
    %c0 = arith.constant 0 : index
    %c0_0 = arith.constant 0 : index
    %c0_1 = arith.constant 0 : index
    %0 = vector.load %arg1[%c0, %c0_0, %c0_1] : memref<1x80x196xf32, #tpu.memory_space<vmem>>, vector<1x80x196xf32>
    %cst = arith.constant dense<0.000000e+00> : vector<80xf32>
    %1 = vector.multi_reduction <add>, %0, %cst [0, 2] : vector<1x80x196xf32> to vector<80xf32>
    %2 = vector.shape_cast %1 : vector<80xf32> to vector<1x80x1xf32>
    %cst_2 = arith.constant 0.00510204071 : f32
    %3 = vector.broadcast %cst_2 : f32 to vector<1x80x1xf32>
    %4 = arith.mulf %2, %3 : vector<1x80x1xf32>
    %c0_3 = arith.constant 0 : index
    %c0_4 = arith.constant 0 : index
    %c0_5 = arith.constant 0 : index
    %5 = vector.load %arg1[%c0_3, %c0_4, %c0_5] : memref<1x80x196xf32, #tpu.memory_space<vmem>>, vector<1x80x196xf32>
    %6 = vector.broadcast %4 : vector<1x80x1xf32> to vector<1x80x196xf32>
    %7 = arith.subf %5, %6 : vector<1x80x196xf32>
    %8 = arith.mulf %7, %7 : vector<1x80x196xf32>
    %cst_6 = arith.constant dense<0.000000e+00> : vector<80xf32>
    %9 = vector.multi_reduction <add>, %8, %cst_6 [0, 2] : vector<1x80x196xf32> to vector<80xf32>
    %10 = vector.shape_cast %9 : vector<80xf32> to vector<1x80x1xf32>
    %cst_7 = arith.constant 0.00510204071 : f32
    %11 = vector.broadcast %cst_7 : f32 to vector<1x80x1xf32>
    %12 = arith.mulf %10, %11 : vector<1x80x1xf32>
    %cst_8 = arith.constant 1.000000e-03 : f32
    %13 = vector.broadcast %cst_8 : f32 to vector<1x80x1xf32>
    %14 = arith.addf %12, %13 : vector<1x80x1xf32>
    %15 = math.rsqrt %14 : vector<1x80x1xf32>
    %c0_9 = arith.constant 0 : index
    %c0_10 = arith.constant 0 : index
    %16 = vector.load %arg2[%c0_9, %c0_10] : memref<80x2xf32, #tpu.memory_space<vmem>>, vector<80x1xf32>
    %17 = vector.shape_cast %16 : vector<80x1xf32> to vector<1x80x1xf32>
    %c0_11 = arith.constant 0 : index
    %c1 = arith.constant 1 : index
    %18 = vector.load %arg2[%c0_11, %c1] : memref<80x2xf32, #tpu.memory_space<vmem>>, vector<80x1xf32>
    %19 = vector.shape_cast %18 : vector<80x1xf32> to vector<1x80x1xf32>
    %20 = arith.mulf %15, %17 : vector<1x80x1xf32>
    %21 = arith.mulf %4, %20 : vector<1x80x1xf32>
    %22 = arith.subf %19, %21 : vector<1x80x1xf32>
    %c0_12 = arith.constant 0 : index
    %c0_13 = arith.constant 0 : index
    %c0_14 = arith.constant 0 : index
    %23 = vector.load %arg1[%c0_12, %c0_13, %c0_14] : memref<1x80x196xf32, #tpu.memory_space<vmem>>, vector<1x80x196xf32>
    %24 = vector.broadcast %20 : vector<1x80x1xf32> to vector<1x80x196xf32>
    %25 = arith.mulf %23, %24 : vector<1x80x196xf32>
    %26 = vector.broadcast %22 : vector<1x80x1xf32> to vector<1x80x196xf32>
    %27 = arith.addf %25, %26 : vector<1x80x196xf32>
    %c0_15 = arith.constant 0 : index
    %c0_16 = arith.constant 0 : index
    %c0_17 = arith.constant 0 : index
    %28 = vector.load %arg3[%c0_15, %c0_16, %c0_17] : memref<1x80x196xf32, #tpu.memory_space<vmem>>, vector<1x80x196xf32>
    tpu.vector_store %arg3[%c0_15, %c0_16, %c0_17], %27 {strides = array<i32>} : memref<1x80x196xf32, #tpu.memory_space<vmem>>, vector<1x80x196xf32>,
    return
  }
  func.func @transform_0(%arg0: i32) -> (i32, i32, i32) {
    %c0_i32 = arith.constant 0 : i32
    %c0_i32_0 = arith.constant 0 : i32
    %c0_i32_1 = arith.constant 0 : i32
    return %c0_i32, %arg0, %c0_i32_0 : i32, i32, i32
  }
  func.func @transform_1(%arg0: i32) -> (i32, i32) {
    %c0_i32 = arith.constant 0 : i32
    %c0_i32_0 = arith.constant 0 : i32
    return %arg0, %c0_i32 : i32, i32
  }
  func.func @transform_2(%arg0: i32) -> (i32, i32, i32) {
    %c0_i32 = arith.constant 0 : i32
    %c0_i32_0 = arith.constant 0 : i32
    %c0_i32_1 = arith.constant 0 : i32
    return %c0_i32, %arg0, %c0_i32_0 : i32, i32, i32
  }
}

</mosaic_0001>

<llo_original>
// kernel: batchnorm2d_train.1
$region0: #{batchnorm2d_train.1}
  #allocation0 [shape = 'u32[]', space=smem, size = 0x4, offset = 0x4, fixed_abs, tag = 'smem constant byte address 0x4 - core index']
  #allocation1 [shape = 'u32[72,128]{1,0:T(1,128)}', space=vmem, size = 0x9000, scoped, tag = 'internal scratch']
  %s0 = inlined_call_operand.vmem [shape: f32[1,160,196], index: 0, kind: input, shape index: {}]
  %s1 = inlined_call_operand.vmem [shape: f32[160,2], index: 1, kind: input, shape index: {}]
  %s2 = inlined_call_operand.vmem [shape: f32[1,160,196], index: 2, kind: output, shape index: {}]
  %s3 = sld [smem:[#allocation0]]
  $region41: #{batchnorm2d_train.1} parent=0
    _
  %s5 = ssub.s32 1, %s3
  %s6 = scalar_select 0, %s5, %s3
  loop: start=0, step=1, limit=4
  $region2: #{batchnorm2d_train.1} parent=0 // loop_pre_header
    _
  $region3: #{batchnorm2d_train.1} parent=0 // loop_header
    %s8 = sphi 0, %s12
    %p9 = scmp.ge.s32.totalorder %s8, 4
    %s18 = sphi 0, %s20
    %s21 = sphi 0, %s18
    %s22 = sphi 0, %s21
    %s38 = sphi 0, %s22
    %s44 = sphi 0, %s46
    %s47 = sphi 0, %s44
    %s48 = sphi 0, %s47
    %s64 = sphi 0, %s48
    %s70 = sphi 0, %s72
    %s73 = sphi 0, %s70
    %s74 = sphi 0, %s73
    %s90 = sphi 0, %s74
  $region4: #{batchnorm2d_train.1} parent=0 // loop_header_branch
    %11 = sbr.rel (%p9) target = $region8
  $region5: #{batchnorm2d_train.1} parent=0 // loop_body
    %s13 = ssub.s32 %s8, 1
    %s14 = ssub.s32 %s8, 2
    %s15 = sadd.s32 %s8, 1
    %s16 = ssub.s32 %s8, %s15
    %p17 = scmp.eq.s32.totalorder %s16, 0
    %s19 = sadd.s32 %s18, 1
    %s20 = scalar_select %p17, %s18, %s19
    %p23 = pneg %p17
    %p24 = scmp.eq.s32.totalorder %s8, 1
    %p25 = por %p23, %p24
    %p26 = scmp.ne.s32.totalorder %s18, %s21
    %p27 = scmp.eq.s32.totalorder %s8, 0
    %p28 = por %p26, %p27
    %p29 = scmp.ne.s32.totalorder %s18, %s21
    %p30 = scmp.eq.s32.totalorder %s13, 1
    %p31 = por %p29, %p30
    %p32 = scmp.ne.s32.totalorder %s21, %s22
    %p33 = scmp.eq.s32.totalorder %s13, 0
    %p34 = por %p32, %p33
    %p35 = scmp.ne.s32.totalorder %s21, %s22
    %p36 = scmp.eq.s32.totalorder %s14, 1
    %p37 = por %p35, %p36
    %p39 = scmp.ne.s32.totalorder %s22, %s38
    %p40 = scmp.eq.s32.totalorder %s14, 0
    %p41 = por %p39, %p40
    %s42 = ssub.s32 %s8, %s15
    %p43 = scmp.eq.s32.totalorder %s42, 0
    %s45 = sadd.s32 %s44, 1
    %s46 = scalar_select %p43, %s44, %s45
    %p49 = pneg %p43
    %p50 = scmp.eq.s32.totalorder %s8, 1
    %p51 = por %p49, %p50
    %p52 = scmp.ne.s32.totalorder %s44, %s47
    %p53 = scmp.eq.s32.totalorder %s8, 0
    %p54 = por %p52, %p53
    %p55 = scmp.ne.s32.totalorder %s44, %s47
    %p56 = scmp.eq.s32.totalorder %s13, 1
    %p57 = por %p55, %p56
    %p58 = scmp.ne.s32.totalorder %s47, %s48
    %p59 = scmp.eq.s32.totalorder %s13, 0
    %p60 = por %p58, %p59
    %p61 = scmp.ne.s32.totalorder %s47, %s48
    %p62 = scmp.eq.s32.totalorder %s14, 1
    %p63 = por %p61, %p62
    %p65 = scmp.ne.s32.totalorder %s48, %s64
    %p66 = scmp.eq.s32.totalorder %s14, 0
    %p67 = por %p65, %p66
    %s68 = ssub.s32 %s8, %s15
    %p69 = scmp.eq.s32.totalorder %s68, 0
    %s71 = sadd.s32 %s70, 1
    %s72 = scalar_select %p69, %s70, %s71
    %p75 = pneg %p69
    %p76 = scmp.eq.s32.totalorder %s8, 1
    %p77 = por %p75, %p76
    %p78 = scmp.ne.s32.totalorder %s70, %s73
    %p79 = scmp.eq.s32.totalorder %s8, 0
    %p80 = por %p78, %p79
    %p81 = scmp.ne.s32.totalorder %s70, %s73
    %p82 = scmp.eq.s32.totalorder %s13, 1
    %p83 = por %p81, %p82
    %p84 = scmp.ne.s32.totalorder %s73, %s74
    %p85 = scmp.eq.s32.totalorder %s13, 0
    %p86 = por %p84, %p85
    %p87 = scmp.ne.s32.totalorder %s73, %s74
    %p88 = scmp.eq.s32.totalorder %s14, 1
    %p89 = por %p87, %p88
    %p91 = scmp.ne.s32.totalorder %s74, %s90
    %p92 = scmp.eq.s32.totalorder %s14, 0
    %p93 = por %p91, %p92
    %p94 = scmp.le.s32.totalorder 1, %s8
    %p95 = scmp.lt.s32.totalorder %s8, 3
    %p96 = pnand %p94, %p95
    %p97 = pneg %p96
    // Predicated region
    $region9: #{batchnorm2d_train.1} parent=5 // pred_check
      _
    $region10: #{batchnorm2d_train.1} parent=5 // pred_check_branch
      %99 = sbr.rel (%p96) target = $region12
    $region11: #{batchnorm2d_train.1} parent=5 // pred_region
      %s100 = ssub.s32 %s8, 1
    $region12: #{batchnorm2d_train.1} parent=5 // pred_fallthru
      _
    %p101 = scmp.lt.s32.totalorder %s8, 2
    // Predicated region
    $region13: #{batchnorm2d_train.1} parent=5 // pred_check
      %p102 = pneg %p101
    $region14: #{batchnorm2d_train.1} parent=5 // pred_check_branch
      %104 = sbr.rel (%p102) target = $region16
    $region15: #{batchnorm2d_train.1} parent=5 // pred_region
      // Predicated region
      $region17: #{batchnorm2d_train.1} parent=15 // pred_check
        %p105 = pneg %p28
      $region18: #{batchnorm2d_train.1} parent=15 // pred_check_branch
        %107 = sbr.rel (%p105) target = $region20
      $region19: #{batchnorm2d_train.1} parent=15 // pred_region
        %s108 = smul.u32 10, %s8
        %p109 = scmp.lt.s32.totalorder %s108, 19
        %s110 = scalar_select %p109, %s108, 19
        %s111 = smul.addr %s110, 2
        %s112 = smul.addr %s111, 8
        %s113 = scalar_lea.vmem %s0, %s112
        %s114 = smul.u32 10, %s8
      $region20: #{batchnorm2d_train.1} parent=15 // pred_fallthru
        _
      // Predicated region
      $region21: #{batchnorm2d_train.1} parent=15 // pred_check
        %p115 = pneg %p54
      $region22: #{batchnorm2d_train.1} parent=15 // pred_check_branch
        %117 = sbr.rel (%p115) target = $region24
      $region23: #{batchnorm2d_train.1} parent=15 // pred_region
        %s118 = smul.u32 10, %s8
        %p119 = scmp.lt.s32.totalorder %s118, 19
        %s120 = scalar_select %p119, %s118, 19
        %s121 = smul.addr %s120, 8
        %s122 = scalar_lea.vmem %s1, %s121
        %s123 = smul.u32 10, %s8
      $region24: #{batchnorm2d_train.1} parent=15 // pred_fallthru
        _
    $region16: #{batchnorm2d_train.1} parent=5 // pred_fallthru
      _
    %p124 = scmp.le.s32.totalorder 1, %s8
    %p125 = scmp.lt.s32.totalorder %s8, 3
    %p126 = pnand %p124, %p125
    %p127 = pneg %p126
    // Predicated region
    $region25: #{batchnorm2d_train.1} parent=5 // pred_check
      _
    $region26: #{batchnorm2d_train.1} parent=5 // pred_check_branch
      %129 = sbr.rel (%p126) target = $region28
    $region27: #{batchnorm2d_train.1} parent=5 // pred_region
      %s130 = ssub.s32 %s8, 1
      %s131 = smul.u32 10, %s13
      %p132 = scmp.lt.s32.totalorder %s131, 19
      %s133 = scalar_select %p132, %s131, 19
      %s134 = smul.addr %s133, 2
      %s135 = smul.addr %s134, 8
      %s136 = scalar_lea.vmem %s0, %s135
      %p137 = pneg %p34
      %p138 = pneg %p31
      %s139 = smul.u32 10, %s13
      %p140 = scmp.lt.s32.totalorder %s139, 19
      %s141 = scalar_select %p140, %s139, 19
      %s142 = smul.addr %s141, 8
      %s143 = scalar_lea.vmem %s1, %s142
      %p144 = pneg %p60
      %p145 = pneg %p57
      %p146 = pneg %p86
      %p147 = pneg %p83
      %s148 = smul.u32 10, %s13
      %p149 = scmp.lt.s32.totalorder %s148, 19
      %s150 = scalar_select %p149, %s148, 19
      %s151 = smul.addr %s150, 2
      %s152 = smul.addr %s151, 8
      %s153 = scalar_lea.vmem %s2, %s152
      %s154 = smul.u32 10, %s13
      %p155 = scmp.lt.s32.totalorder %s154, 19
      %s156 = scalar_select %p155, %s154, 19
      %s157 = smul.addr %s156, 2
      %s158 = smul.addr %s157, 8
      %s159 = scalar_lea.vmem %s0, %s158
      %s160 = smul.u32 10, %s13
      %s161 = smul.u32 10, %s13
      %p162 = scmp.lt.s32.totalorder %s161, 19
      %s163 = scalar_select %p162, %s161, 19
      %s164 = smul.addr %s163, 8
      %s165 = scalar_lea.vmem %s1, %s164
      %s166 = smul.u32 10, %s13
      %s167 = smul.u32 10, %s13
      %p168 = scmp.lt.s32.totalorder %s167, 19
      %s169 = scalar_select %p168, %s167, 19
      %s170 = smul.addr %s169, 2
      %s171 = smul.addr %s170, 8
      %s172 = scalar_lea.vmem %s2, %s171
      %s173 = smul.u32 10, %s13
      %v174 = vld [vmem:[%s159] sm:$0xff]
      %v175 = vld [vmem:[%s159 + $0x8] sm:$0xff]
      %v176 = vld [vmem:[%s159 + $0x10] sm:$0xff]
      %v177 = vld [vmem:[%s159 + $0x18] sm:$0xff]
      %v178 = vld [vmem:[%s159 + $0x20] sm:$0xff]
      %v179 = vld [vmem:[%s159 + $0x28] sm:$0xff]
      %v180 = vld [vmem:[%s159 + $0x30] sm:$0xff]
      %v181 = vld [vmem:[%s159 + $0x38] sm:$0xff]
      %v182 = vld [vmem:[%s159 + $0x40] sm:$0xff]
      %v183 = vld [vmem:[%s159 + $0x48] sm:$0xff]
      %v184 = vld [vmem:[%s159 + $0x50] sm:$0xff]
      %v185 = vld [vmem:[%s159 + $0x58] sm:$0xff]
      %v186 = vld [vmem:[%s159 + $0x60] sm:$0xff]
      %v187 = vld [vmem:[%s159 + $0x68] sm:$0xff]
      %v188 = vld [vmem:[%s159 + $0x70] sm:$0xff]
      %v189 = vld [vmem:[%s159 + $0x78] sm:$0xff]
      %v190 = vld [vmem:[%s159 + $0x80] sm:$0xff]
      %v191 = vld [vmem:[%s159 + $0x88] sm:$0xff]
      %v192 = vld [vmem:[%s159 + $0x90] sm:$0xff]
      %v193 = vld [vmem:[%s159 + $0x98] sm:$0xff]
      %vm194 = vcmask 556032
      %v195 = vsel %vm194, %v175, 0.0
      %v196 = vadd.f32 %v174, %v195
      %197 = vadd.xlane.f32.xlu0 %v196
      %v198 = vpop.xlane.xlu0 %197
      %v199 = vsel %vm194, %v177, 0.0
      %v200 = vadd.f32 %v176, %v199
      %201 = vadd.xlane.f32.xlu0 %v200
      %v202 = vpop.xlane.xlu0 %201
      %v203 = vsel %vm194, %v179, 0.0
      %v204 = vadd.f32 %v178, %v203
      %205 = vadd.xlane.f32.xlu0 %v204
      %v206 = vpop.xlane.xlu0 %205
      %v207 = vsel %vm194, %v181, 0.0
      %v208 = vadd.f32 %v180, %v207
      %209 = vadd.xlane.f32.xlu0 %v208
      %v210 = vpop.xlane.xlu0 %209
      %v211 = vsel %vm194, %v183, 0.0
      %v212 = vadd.f32 %v182, %v211
      %213 = vadd.xlane.f32.xlu0 %v212
      %v214 = vpop.xlane.xlu0 %213
      %v215 = vsel %vm194, %v185, 0.0
      %v216 = vadd.f32 %v184, %v215
      %217 = vadd.xlane.f32.xlu0 %v216
      %v218 = vpop.xlane.xlu0 %217
      %v219 = vsel %vm194, %v187, 0.0
      %v220 = vadd.f32 %v186, %v219
      %221 = vadd.xlane.f32.xlu0 %v220
      %v222 = vpop.xlane.xlu0 %221
      %v223 = vsel %vm194, %v189, 0.0
      %v224 = vadd.f32 %v188, %v223
      %225 = vadd.xlane.f32.xlu0 %v224
      %v226 = vpop.xlane.xlu0 %225
      %v227 = vsel %vm194, %v191, 0.0
      %v228 = vadd.f32 %v190, %v227
      %229 = vadd.xlane.f32.xlu0 %v228
      %v230 = vpop.xlane.xlu0 %229
      %v231 = vsel %vm194, %v193, 0.0
      %v232 = vadd.f32 %v192, %v231
      %233 = vadd.xlane.f32.xlu0 %v232
      %v234 = vpop.xlane.xlu0 %233
      %v235 = vmul.f32 %v198, 0.0051020407
      %v236 = vmul.f32 %v202, 0.0051020407
      %v237 = vmul.f32 %v206, 0.0051020407
      %v238 = vmul.f32 %v210, 0.0051020407
      %v239 = vmul.f32 %v214, 0.0051020407
      %v240 = vmul.f32 %v218, 0.0051020407
      %v241 = vmul.f32 %v222, 0.0051020407
      %v242 = vmul.f32 %v226, 0.0051020407
      %v243 = vmul.f32 %v230, 0.0051020407
      %v244 = vmul.f32 %v234, 0.0051020407
      %v245 = vsub.f32 %v174, %v235
      %v246 = vsub.f32 %v175, %v235
      %v247 = vsub.f32 %v176, %v236
      %v248 = vsub.f32 %v177, %v236
      %v249 = vsub.f32 %v178, %v237
      %v250 = vsub.f32 %v179, %v237
      %v251 = vsub.f32 %v180, %v238
      %v252 = vsub.f32 %v181, %v238
      %v253 = vsub.f32 %v182, %v239
      %v254 = vsub.f32 %v183, %v239
      %v255 = vsub.f32 %v184, %v240
      %v256 = vsub.f32 %v185, %v240
      %v257 = vsub.f32 %v186, %v241
      %v258 = vsub.f32 %v187, %v241
      %v259 = vsub.f32 %v188, %v242
      %v260 = vsub.f32 %v189, %v242
      %v261 = vsub.f32 %v190, %v243
      %v262 = vsub.f32 %v191, %v243
      %v263 = vsub.f32 %v192, %v244
      %v264 = vsub.f32 %v193, %v244
      %v265 = vmul.f32 %v245, %v245
      %v266 = vmul.f32 %v246, %v246
      %v267 = vmul.f32 %v247, %v247
      %v268 = vmul.f32 %v248, %v248
      %v269 = vmul.f32 %v249, %v249
      %v270 = vmul.f32 %v250, %v250
      %v271 = vmul.f32 %v251, %v251
      %v272 = vmul.f32 %v252, %v252
      %v273 = vmul.f32 %v253, %v253
      %v274 = vmul.f32 %v254, %v254
      %v275 = vmul.f32 %v255, %v255
      %v276 = vmul.f32 %v256, %v256
      %v277 = vmul.f32 %v257, %v257
      %v278 = vmul.f32 %v258, %v258
      %v279 = vmul.f32 %v259, %v259
      %v280 = vmul.f32 %v260, %v260
      %v281 = vmul.f32 %v261, %v261
      %v282 = vmul.f32 %v262, %v262
      %v283 = vmul.f32 %v263, %v263
      %v284 = vmul.f32 %v264, %v264
      %v285 = vsel %vm194, %v266, 0.0
      %v286 = vadd.f32 %v265, %v285
      %287 = vadd.xlane.f32.xlu0 %v286
      %v288 = vpop.xlane.xlu0 %287
      %v289 = vsel %vm194, %v268, 0.0
      %v290 = vadd.f32 %v267, %v289
      %291 = vadd.xlane.f32.xlu0 %v290
      %v292 = vpop.xlane.xlu0 %291
      %v293 = vsel %vm194, %v270, 0.0
      %v294 = vadd.f32 %v269, %v293
      %295 = vadd.xlane.f32.xlu0 %v294
      %v296 = vpop.xlane.xlu0 %295
      %v297 = vsel %vm194, %v272, 0.0
      %v298 = vadd.f32 %v271, %v297
      %299 = vadd.xlane.f32.xlu0 %v298
      %v300 = vpop.xlane.xlu0 %299
      %v301 = vsel %vm194, %v274, 0.0
      %v302 = vadd.f32 %v273, %v301
      %303 = vadd.xlane.f32.xlu0 %v302
      %v304 = vpop.xlane.xlu0 %303
      %v305 = vsel %vm194, %v276, 0.0
      %v306 = vadd.f32 %v275, %v305
      %307 = vadd.xlane.f32.xlu0 %v306
      %v308 = vpop.xlane.xlu0 %307
      %v309 = vsel %vm194, %v278, 0.0
      %v310 = vadd.f32 %v277, %v309
      %311 = vadd.xlane.f32.xlu0 %v310
      %v312 = vpop.xlane.xlu0 %311
      %v313 = vsel %vm194, %v280, 0.0
      %v314 = vadd.f32 %v279, %v313
      %315 = vadd.xlane.f32.xlu0 %v314
      %v316 = vpop.xlane.xlu0 %315
      %v317 = vsel %vm194, %v282, 0.0
      %v318 = vadd.f32 %v281, %v317
      %319 = vadd.xlane.f32.xlu0 %v318
      %v320 = vpop.xlane.xlu0 %319
      %v321 = vsel %vm194, %v284, 0.0
      %v322 = vadd.f32 %v283, %v321
      %323 = vadd.xlane.f32.xlu0 %v322
      %v324 = vpop.xlane.xlu0 %323
      %v325 = vmul.f32 %v288, 0.0051020407
      %v326 = vmul.f32 %v292, 0.0051020407
      %v327 = vmul.f32 %v296, 0.0051020407
      %v328 = vmul.f32 %v300, 0.0051020407
      %v329 = vmul.f32 %v304, 0.0051020407
      %v330 = vmul.f32 %v308, 0.0051020407
      %v331 = vmul.f32 %v312, 0.0051020407
      %v332 = vmul.f32 %v316, 0.0051020407
      %v333 = vmul.f32 %v320, 0.0051020407
      %v334 = vmul.f32 %v324, 0.0051020407
      %v335 = vadd.f32 %v325, 0.001
      %v336 = vadd.f32 %v326, 0.001
      %v337 = vadd.f32 %v327, 0.001
      %v338 = vadd.f32 %v328, 0.001
      %v339 = vadd.f32 %v329, 0.001
      %v340 = vadd.f32 %v330, 0.001
      %v341 = vadd.f32 %v331, 0.001
      %v342 = vadd.f32 %v332, 0.001
      %v343 = vadd.f32 %v333, 0.001
      %v344 = vadd.f32 %v334, 0.001
      %v345 = vrsqrt.pop %v335
      %v346 = vmul.f32 %v345, %v335
      %v347 = vmul.f32 %v346, %v345
      %v348 = vmul.f32 0.5, %v347
      %v349 = vsub.f32 1.5, %v348
      %v350 = vmul.f32 %v345, %v349
      %vm351 = vweird.f32 %v335
      %vm352 = vweird.f32 %v345
      %vm353 = vmor %vm351, %vm352
      %v354 = vsel %vm353, %v345, %v350
      %v355 = vrsqrt.pop %v336
      %v356 = vmul.f32 %v355, %v336
      %v357 = vmul.f32 %v356, %v355
      %v358 = vmul.f32 0.5, %v357
      %v359 = vsub.f32 1.5, %v358
      %v360 = vmul.f32 %v355, %v359
      %vm361 = vweird.f32 %v336
      %vm362 = vweird.f32 %v355
      %vm363 = vmor %vm361, %vm362
      %v364 = vsel %vm363, %v355, %v360
      %v365 = vrsqrt.pop %v337
      %v366 = vmul.f32 %v365, %v337
      %v367 = vmul.f32 %v366, %v365
      %v368 = vmul.f32 0.5, %v367
      %v369 = vsub.f32 1.5, %v368
      %v370 = vmul.f32 %v365, %v369
      %vm371 = vweird.f32 %v337
      %vm372 = vweird.f32 %v365
      %vm373 = vmor %vm371, %vm372
      %v374 = vsel %vm373, %v365, %v370
      %v375 = vrsqrt.pop %v338
      %v376 = vmul.f32 %v375, %v338
      %v377 = vmul.f32 %v376, %v375
      %v378 = vmul.f32 0.5, %v377
      %v379 = vsub.f32 1.5, %v378
      %v380 = vmul.f32 %v375, %v379
      %vm381 = vweird.f32 %v338
      %vm382 = vweird.f32 %v375
      %vm383 = vmor %vm381, %vm382
      %v384 = vsel %vm383, %v375, %v380
      %v385 = vrsqrt.pop %v339
      %v386 = vmul.f32 %v385, %v339
      %v387 = vmul.f32 %v386, %v385
      %v388 = vmul.f32 0.5, %v387
      %v389 = vsub.f32 1.5, %v388
      %v390 = vmul.f32 %v385, %v389
      %vm391 = vweird.f32 %v339
      %vm392 = vweird.f32 %v385
      %vm393 = vmor %vm391, %vm392
      %v394 = vsel %vm393, %v385, %v390
      %v395 = vrsqrt.pop %v340
      %v396 = vmul.f32 %v395, %v340
      %v397 = vmul.f32 %v396, %v395
      %v398 = vmul.f32 0.5, %v397
      %v399 = vsub.f32 1.5, %v398
      %v400 = vmul.f32 %v395, %v399
      %vm401 = vweird.f32 %v340
      %vm402 = vweird.f32 %v395
      %vm403 = vmor %vm401, %vm402
      %v404 = vsel %vm403, %v395, %v400
      %v405 = vrsqrt.pop %v341
      %v406 = vmul.f32 %v405, %v341
      %v407 = vmul.f32 %v406, %v405
      %v408 = vmul.f32 0.5, %v407
      %v409 = vsub.f32 1.5, %v408
      %v410 = vmul.f32 %v405, %v409
      %vm411 = vweird.f32 %v341
      %vm412 = vweird.f32 %v405
      %vm413 = vmor %vm411, %vm412
      %v414 = vsel %vm413, %v405, %v410
      %v415 = vrsqrt.pop %v342
      %v416 = vmul.f32 %v415, %v342
      %v417 = vmul.f32 %v416, %v415
      %v418 = vmul.f32 0.5, %v417
      %v419 = vsub.f32 1.5, %v418
      %v420 = vmul.f32 %v415, %v419
      %vm421 = vweird.f32 %v342
      %vm422 = vweird.f32 %v415
      %vm423 = vmor %vm421, %vm422
      %v424 = vsel %vm423, %v415, %v420
      %v425 = vrsqrt.pop %v343
      %v426 = vmul.f32 %v425, %v343
      %v427 = vmul.f32 %v426, %v425
      %v428 = vmul.f32 0.5, %v427
      %v429 = vsub.f32 1.5, %v428
      %v430 = vmul.f32 %v425, %v429
      %vm431 = vweird.f32 %v343
      %vm432 = vweird.f32 %v425
      %vm433 = vmor %vm431, %vm432
      %v434 = vsel %vm433, %v425, %v430
      %v435 = vrsqrt.pop %v344
      %v436 = vmul.f32 %v435, %v344
      %v437 = vmul.f32 %v436, %v435
      %v438 = vmul.f32 0.5, %v437
      %v439 = vsub.f32 1.5, %v438
      %v440 = vmul.f32 %v435, %v439
      %vm441 = vweird.f32 %v344
      %vm442 = vweird.f32 %v435
      %vm443 = vmor %vm441, %vm442
      %v444 = vsel %vm443, %v435, %v440
      %v445 = vld [vmem:[%s165] sm:$0xff]
      %v446 = vld [vmem:[%s165 + $0x8] sm:$0xff]
      %v447 = vld [vmem:[%s165 + $0x10] sm:$0xff]
      %v448 = vld [vmem:[%s165 + $0x18] sm:$0xff]
      %v449 = vld [vmem:[%s165 + $0x20] sm:$0xff]
      %v450 = vld [vmem:[%s165 + $0x28] sm:$0xff]
      %v451 = vld [vmem:[%s165 + $0x30] sm:$0xff]
      %v452 = vld [vmem:[%s165 + $0x38] sm:$0xff]
      %v453 = vld [vmem:[%s165 + $0x40] sm:$0xff]
      %v454 = vld [vmem:[%s165 + $0x48] sm:$0xff]
      %v455 = vmul.f32 %v354, %v445
      %v456 = vmul.f32 %v364, %v446
      %v457 = vmul.f32 %v374, %v447
      %v458 = vmul.f32 %v384, %v448
      %v459 = vmul.f32 %v394, %v449
      %v460 = vmul.f32 %v404, %v450
      %v461 = vmul.f32 %v414, %v451
      %v462 = vmul.f32 %v424, %v452
      %v463 = vmul.f32 %v434, %v453
      %v464 = vmul.f32 %v444, %v454
      %v465 = vmul.f32 %v235, %v455
      %v466 = vmul.f32 %v236, %v456
      %v467 = vmul.f32 %v237, %v457
      %v468 = vmul.f32 %v238, %v458
      %v469 = vmul.f32 %v239, %v459
      %v470 = vmul.f32 %v240, %v460
      %v471 = vmul.f32 %v241, %v461
      %v472 = vmul.f32 %v242, %v462
      %v473 = vmul.f32 %v243, %v463
      %v474 = vmul.f32 %v244, %v464
      %485 = vrot.lane.b32.xlu0 %v465, 1
      %v486 = vpop.permute.xlu0 %485
      %487 = vrot.lane.b32.xlu0 %v466, 1
      %v488 = vpop.permute.xlu0 %487
      %489 = vrot.lane.b32.xlu0 %v467, 1
      %v490 = vpop.permute.xlu0 %489
      %491 = vrot.lane.b32.xlu0 %v468, 1
      %v492 = vpop.permute.xlu0 %491
      %493 = vrot.lane.b32.xlu0 %v469, 1
      %v494 = vpop.permute.xlu0 %493
      %495 = vrot.lane.b32.xlu0 %v470, 1
      %v496 = vpop.permute.xlu0 %495
      %497 = vrot.lane.b32.xlu0 %v471, 1
      %v498 = vpop.permute.xlu0 %497
      %499 = vrot.lane.b32.xlu0 %v472, 1
      %v500 = vpop.permute.xlu0 %499
      %501 = vrot.lane.b32.xlu0 %v473, 1
      %v502 = vpop.permute.xlu0 %501
      %503 = vrot.lane.b32.xlu0 %v474, 1
      %v504 = vpop.permute.xlu0 %503
      %v515 = vsub.f32 %v445, %v486
      %v516 = vsub.f32 %v446, %v488
      %v517 = vsub.f32 %v447, %v490
      %v518 = vsub.f32 %v448, %v492
      %v519 = vsub.f32 %v449, %v494
      %v520 = vsub.f32 %v450, %v496
      %v521 = vsub.f32 %v451, %v498
      %v522 = vsub.f32 %v452, %v500
      %v523 = vsub.f32 %v453, %v502
      %v524 = vsub.f32 %v454, %v504
      %526 = vset.pattern.permute.xlu0 0
      %527 = vperm.xlu0 %526, %v455
      %v528 = vpop.permute.xlu0 %527
      %531 = vset.pattern.permute.xlu0 0
      %532 = vperm.xlu0 %531, %v456
      %v533 = vpop.permute.xlu0 %532
      %536 = vset.pattern.permute.xlu0 0
      %537 = vperm.xlu0 %536, %v457
      %v538 = vpop.permute.xlu0 %537
      %541 = vset.pattern.permute.xlu0 0
      %542 = vperm.xlu0 %541, %v458
      %v543 = vpop.permute.xlu0 %542
      %546 = vset.pattern.permute.xlu0 0
      %547 = vperm.xlu0 %546, %v459
      %v548 = vpop.permute.xlu0 %547
      %551 = vset.pattern.permute.xlu0 0
      %552 = vperm.xlu0 %551, %v460
      %v553 = vpop.permute.xlu0 %552
      %556 = vset.pattern.permute.xlu0 0
      %557 = vperm.xlu0 %556, %v461
      %v558 = vpop.permute.xlu0 %557
      %561 = vset.pattern.permute.xlu0 0
      %562 = vperm.xlu0 %561, %v462
      %v563 = vpop.permute.xlu0 %562
      %566 = vset.pattern.permute.xlu0 0
      %567 = vperm.xlu0 %566, %v463
      %v568 = vpop.permute.xlu0 %567
      %571 = vset.pattern.permute.xlu0 0
      %572 = vperm.xlu0 %571, %v464
      %v573 = vpop.permute.xlu0 %572
      %v575 = vmul.f32 %v174, %v528
      %v576 = vmul.f32 %v175, %v528
      %v577 = vmul.f32 %v176, %v533
      %v578 = vmul.f32 %v177, %v533
      %v579 = vmul.f32 %v178, %v538
      %v580 = vmul.f32 %v179, %v538
      %v581 = vmul.f32 %v180, %v543
      %v582 = vmul.f32 %v181, %v543
      %v583 = vmul.f32 %v182, %v548
      %v584 = vmul.f32 %v183, %v548
      %v585 = vmul.f32 %v184, %v553
      %v586 = vmul.f32 %v185, %v553
      %v587 = vmul.f32 %v186, %v558
      %v588 = vmul.f32 %v187, %v558
      %v589 = vmul.f32 %v188, %v563
      %v590 = vmul.f32 %v189, %v563
      %v591 = vmul.f32 %v190, %v568
      %v592 = vmul.f32 %v191, %v568
      %v593 = vmul.f32 %v192, %v573
      %v594 = vmul.f32 %v193, %v573
      %596 = vset.pattern.permute.xlu0 1
      %597 = vperm.xlu0 %596, %v515
      %v598 = vpop.permute.xlu0 %597
      %601 = vset.pattern.permute.xlu0 1
      %602 = vperm.xlu0 %601, %v516
      %v603 = vpop.permute.xlu0 %602
      %606 = vset.pattern.permute.xlu0 1
      %607 = vperm.xlu0 %606, %v517
      %v608 = vpop.permute.xlu0 %607
      %611 = vset.pattern.permute.xlu0 1
      %612 = vperm.xlu0 %611, %v518
      %v613 = vpop.permute.xlu0 %612
      %616 = vset.pattern.permute.xlu0 1
      %617 = vperm.xlu0 %616, %v519
      %v618 = vpop.permute.xlu0 %617
      %621 = vset.pattern.permute.xlu0 1
      %622 = vperm.xlu0 %621, %v520
      %v623 = vpop.permute.xlu0 %622
      %626 = vset.pattern.permute.xlu0 1
      %627 = vperm.xlu0 %626, %v521
      %v628 = vpop.permute.xlu0 %627
      %631 = vset.pattern.permute.xlu0 1
      %632 = vperm.xlu0 %631, %v522
      %v633 = vpop.permute.xlu0 %632
      %636 = vset.pattern.permute.xlu0 1
      %637 = vperm.xlu0 %636, %v523
      %v638 = vpop.permute.xlu0 %637
      %641 = vset.pattern.permute.xlu0 1
      %642 = vperm.xlu0 %641, %v524
      %v643 = vpop.permute.xlu0 %642
      %v645 = vadd.f32 %v575, %v598
      %v646 = vadd.f32 %v576, %v598
      %v647 = vadd.f32 %v577, %v603
      %v648 = vadd.f32 %v578, %v603
      %v649 = vadd.f32 %v579, %v608
      %v650 = vadd.f32 %v580, %v608
      %v651 = vadd.f32 %v581, %v613
      %v652 = vadd.f32 %v582, %v613
      %v653 = vadd.f32 %v583, %v618
      %v654 = vadd.f32 %v584, %v618
      %v655 = vadd.f32 %v585, %v623
      %v656 = vadd.f32 %v586, %v623
      %v657 = vadd.f32 %v587, %v628
      %v658 = vadd.f32 %v588, %v628
      %v659 = vadd.f32 %v589, %v633
      %v660 = vadd.f32 %v590, %v633
      %v661 = vadd.f32 %v591, %v638
      %v662 = vadd.f32 %v592, %v638
      %v663 = vadd.f32 %v593, %v643
      %v664 = vadd.f32 %v594, %v643
      %665 = vst [vmem:[%s172] sm:$0xff] %v645
      %666 = vst.msk [vmem:[%s172 + $0x8] sm:$0xff] %vm194, %v646
      %667 = vst [vmem:[%s172 + $0x10] sm:$0xff] %v647
      %668 = vst.msk [vmem:[%s172 + $0x18] sm:$0xff] %vm194, %v648
      %669 = vst [vmem:[%s172 + $0x20] sm:$0xff] %v649
      %670 = vst.msk [vmem:[%s172 + $0x28] sm:$0xff] %vm194, %v650
      %671 = vst [vmem:[%s172 + $0x30] sm:$0xff] %v651
      %672 = vst.msk [vmem:[%s172 + $0x38] sm:$0xff] %vm194, %v652
      %673 = vst [vmem:[%s172 + $0x40] sm:$0xff] %v653
      %674 = vst.msk [vmem:[%s172 + $0x48] sm:$0xff] %vm194, %v654
      %675 = vst [vmem:[%s172 + $0x50] sm:$0xff] %v655
      %676 = vst.msk [vmem:[%s172 + $0x58] sm:$0xff] %vm194, %v656
      %677 = vst [vmem:[%s172 + $0x60] sm:$0xff] %v657
      %678 = vst.msk [vmem:[%s172 + $0x68] sm:$0xff] %vm194, %v658
      %679 = vst [vmem:[%s172 + $0x70] sm:$0xff] %v659
      %680 = vst.msk [vmem:[%s172 + $0x78] sm:$0xff] %vm194, %v660
      %681 = vst [vmem:[%s172 + $0x80] sm:$0xff] %v661
      %682 = vst.msk [vmem:[%s172 + $0x88] sm:$0xff] %vm194, %v662
      %683 = vst [vmem:[%s172 + $0x90] sm:$0xff] %v663
      %684 = vst.msk [vmem:[%s172 + $0x98] sm:$0xff] %vm194, %v664
      %s685 = smul.u32 10, %s13
      %p686 = scmp.lt.s32.totalorder %s685, 19
      %s687 = scalar_select %p686, %s685, 19
      %s688 = smul.addr %s687, 2
      %s689 = smul.addr %s688, 8
      %s690 = scalar_lea.vmem %s2, %s689
      // Predicated region
      $region29: #{batchnorm2d_train.1} parent=27 // pred_check
        %p691 = pneg %p83
      $region30: #{batchnorm2d_train.1} parent=27 // pred_check_branch
        %693 = sbr.rel (%p691) target = $region32
      $region31: #{batchnorm2d_train.1} parent=27 // pred_region
        %s694 = smul.u32 10, %s13
      $region32: #{batchnorm2d_train.1} parent=27 // pred_fallthru
        _
    $region28: #{batchnorm2d_train.1} parent=5 // pred_fallthru
      _
    %p695 = scmp.le.s32.totalorder 2, %s8
    // Predicated region
    $region33: #{batchnorm2d_train.1} parent=5 // pred_check
      %p696 = pneg %p695
    $region34: #{batchnorm2d_train.1} parent=5 // pred_check_branch
      %698 = sbr.rel (%p696) target = $region36
    $region35: #{batchnorm2d_train.1} parent=5 // pred_region
      %s699 = ssub.s32 %s8, 2
      // Predicated region
      $region37: #{batchnorm2d_train.1} parent=35 // pred_check
        %p700 = pneg %p89
      $region38: #{batchnorm2d_train.1} parent=35 // pred_check_branch
        %702 = sbr.rel (%p700) target = $region40
      $region39: #{batchnorm2d_train.1} parent=35 // pred_region
        %s703 = smul.u32 10, %s14
        %p704 = scmp.lt.s32.totalorder %s703, 19
        %s705 = scalar_select %p704, %s703, 19
        %s706 = smul.addr %s705, 2
        %s707 = smul.addr %s706, 8
        %s708 = scalar_lea.vmem %s2, %s707
      $region40: #{batchnorm2d_train.1} parent=35 // pred_fallthru
        _
    $region36: #{batchnorm2d_train.1} parent=5 // pred_fallthru
      _
  $region6: #{batchnorm2d_train.1} parent=0 // loop_footer
    %s12 = sadd.s32 1, %s8
  $region7: #{batchnorm2d_train.1} parent=0 // loop_footer_branch
    %7 = sbr.rel target = $region3
  $region8: #{batchnorm2d_train.1} parent=0 // loop_exit
    _

</llo_original>
